<compile_context>
chip_gen: v7x
topology: tpu7x:2x2x1
jax: 0.10.0
libtpu: 0.0.40
codegen_flags: <defaults>
</compile_context>

<pallas_src>
import functools

import jax
import jax.numpy as jnp
from jax.experimental import pallas as pl
from jax.experimental.pallas import tpu as pltpu


def rnn_kernel(x_ref, wih_ref, whh_ref, brnn_ref, wfc_ref, bfc_ref, out_ref,
               *, seq_len, batch, hidden_dim):
    # Whole (S*B, E) input block and all weights are VMEM-resident.
    x = x_ref[...]                                   # (S*B, E)
    w_hh = whh_ref[...]                              # (H, H)

    # Hoisted off the serial chain: one batched input projection for all steps.
    xp = (jnp.dot(x, wih_ref[...], preferred_element_type=jnp.float32)
          + brnn_ref[...])                           # (S*B, H)

    # Recurrence: h kept as a loop-carried value (vregs), fully unrolled.
    h = jnp.zeros((batch, hidden_dim), jnp.float32)
    for t in range(seq_len):                         # static trip count
        pre = xp[t * batch:(t + 1) * batch, :] + jnp.dot(
            h, w_hh, preferred_element_type=jnp.float32)
        h = jnp.tanh(pre)

    # Final fc, fused into the same kernel.  wfc/bfc are padded to a 128-wide
    # lane-dense output by the wrapper, so this store is unmasked.
    logits = (jnp.dot(h, wfc_ref[...], preferred_element_type=jnp.float32)
              + bfc_ref[...])
    out_ref[...] = logits.astype(out_ref.dtype)


def rnn_forward(input_mat, embedding, w_ih, w_hh, b_rnn, w_fc, b_fc):
    """input_mat: [seq_len, batch] int32.  Returns [batch, output_dim] float32."""
    seq_len, batch = input_mat.shape
    emb_dim = embedding.shape[1]
    hidden_dim = w_hh.shape[0]
    out_dim = w_fc.shape[1]

    # Embedding lookup (glue, plain JAX gather), flattened so the kernel does a
    # single (S*B, E) @ (E, H) projection.
    embedded = jnp.take(embedding, input_mat, axis=0)            # (S, B, E)
    x_flat = embedded.reshape(seq_len * batch, emb_dim)          # (S*B, E)

    # Pad fc output width to a multiple of 128 lanes for an unmasked store.
    out_pad = pl.cdiv(out_dim, 128) * 128
    w_fc_p = jnp.pad(w_fc, ((0, 0), (0, out_pad - out_dim)))
    b_fc_p = jnp.pad(b_fc, ((0, 0), (0, out_pad - out_dim)))

    kernel = functools.partial(rnn_kernel, seq_len=seq_len, batch=batch,
                               hidden_dim=hidden_dim)

    vmem = pl.BlockSpec(memory_space=pltpu.MemorySpace.VMEM)
    out_padded = pl.pallas_call(
        kernel,
        out_shape=jax.ShapeDtypeStruct((batch, out_pad), jnp.float32),
        in_specs=[vmem] * 6,
        out_specs=vmem,
    )(x_flat, w_ih, w_hh, b_rnn, w_fc_p, b_fc_p)

    # TODO(synk): for large hidden_dim, tile W_hh (single-buffered, v7x has
    # 64 MiB VMEM) instead of whole-array VMEM residency.
    return out_padded[:, :out_dim]


def rnn_reference(input_mat, embedding, w_ih, w_hh, b_rnn, w_fc, b_fc):
    """Pure-JAX reference mirroring the PyTorch forward pass."""
    embedded = jnp.take(embedding, input_mat, axis=0)            # (S, B, E)
    batch = input_mat.shape[1]
    h = jnp.zeros((batch, w_hh.shape[0]), jnp.float32)
    for t in range(embedded.shape[0]):
        h = jnp.tanh(embedded[t] @ w_ih + h @ w_hh + b_rnn)
    return h @ w_fc + b_fc


if __name__ == "__main__":
    # Model hyperparameters (small, deterministic).
    input_dim = 20       # vocab size
    embedding_dim = 16
    hidden_dim = 32
    output_dim = 4
    seq_len = 8
    batch = 2

    key = jax.random.PRNGKey(0)
    k_emb, k_wih, k_whh, k_bih, k_bhh, k_wfc, k_bfc, k_in = jax.random.split(key, 8)

    embedding = jax.random.normal(k_emb, (input_dim, embedding_dim), jnp.float32)
    # PyTorch stores weight_ih_l0 as [H, E]; we keep the transposed [E, H] layout.
    w_ih = 0.1 * jax.random.normal(k_wih, (embedding_dim, hidden_dim), jnp.float32)
    w_hh = 0.1 * jax.random.normal(k_whh, (hidden_dim, hidden_dim), jnp.float32)
    b_ih = 0.1 * jax.random.normal(k_bih, (hidden_dim,), jnp.float32)
    b_hh = 0.1 * jax.random.normal(k_bhh, (hidden_dim,), jnp.float32)
    b_rnn = (b_ih + b_hh).reshape(1, hidden_dim)
    w_fc = 0.1 * jax.random.normal(k_wfc, (hidden_dim, output_dim), jnp.float32)
    b_fc = (0.1 * jax.random.normal(k_bfc, (output_dim,), jnp.float32)
            ).reshape(1, output_dim)

    input_mat = jax.random.randint(k_in, (seq_len, batch), 0, input_dim, jnp.int32)

    out = rnn_forward(input_mat, embedding, w_ih, w_hh, b_rnn, w_fc, b_fc)
    out = jax.block_until_ready(out)

    ref = rnn_reference(input_mat, embedding, w_ih, w_hh, b_rnn, w_fc, b_fc)
    assert out.shape == (batch, output_dim)
    assert jnp.allclose(out, ref, atol=1e-5, rtol=1e-5), "mismatch vs reference"

    print("KERNEL_OK")
</pallas_src>

<mosaic_0001>
module attributes {stable_mosaic.version = 11 : i64} {
  func.func @rnn_kernel(%arg0: memref<16x16xf32, #tpu.memory_space<vmem>>, %arg1: memref<16x32xf32, #tpu.memory_space<vmem>>, %arg2: memref<32x32xf32, #tpu.memory_space<vmem>>, %arg3: memref<1x32xf32, #tpu.memory_space<vmem>>, %arg4: memref<32x128xf32, #tpu.memory_space<vmem>>, %arg5: memref<1x128xf32, #tpu.memory_space<vmem>>, %arg6: memref<2x128xf32, #tpu.memory_space<vmem>>) attributes {dimension_semantics = [], scalar_prefetch = 0 : i64, scratch_operands = 0 : i64, tpu.core_type = #tpu.core_type<tc>} {
    %c0 = arith.constant 0 : index
    %c0_0 = arith.constant 0 : index
    %0 = vector.load %arg0[%c0, %c0_0] : memref<16x16xf32, #tpu.memory_space<vmem>>, vector<16x16xf32>
    %c0_1 = arith.constant 0 : index
    %c0_2 = arith.constant 0 : index
    %1 = vector.load %arg2[%c0_1, %c0_2] : memref<32x32xf32, #tpu.memory_space<vmem>>, vector<32x32xf32>
    %c0_3 = arith.constant 0 : index
    %c0_4 = arith.constant 0 : index
    %2 = vector.load %arg1[%c0_3, %c0_4] : memref<16x32xf32, #tpu.memory_space<vmem>>, vector<16x32xf32>
    %cst = arith.constant dense<0.000000e+00> : vector<16x32xf32>
    %3 = tpu.matmul %0, %2, %cst {dimension_numbers = #tpu.dot_dimension_numbers<[1], [0], [0], [1], [0, 0, 1, 1], [], []>} : vector<16x16xf32>, vector<16x32xf32>, vector<16x32xf32> -> vector<16x32xf32>
    %c0_5 = arith.constant 0 : index
    %c0_6 = arith.constant 0 : index
    %4 = vector.load %arg3[%c0_5, %c0_6] : memref<1x32xf32, #tpu.memory_space<vmem>>, vector<1x32xf32>
    %5 = vector.broadcast %4 : vector<1x32xf32> to vector<16x32xf32>
    %6 = arith.addf %3, %5 : vector<16x32xf32>
    %cst_7 = arith.constant 0.000000e+00 : f32
    %7 = vector.broadcast %cst_7 : f32 to vector<2x32xf32>
    %8 = vector.extract_strided_slice %6 {offsets = [0, 0], sizes = [2, 32], strides = [1, 1]} : vector<16x32xf32> to vector<2x32xf32>
    %cst_8 = arith.constant dense<0.000000e+00> : vector<2x32xf32>
    %9 = tpu.matmul %7, %1, %cst_8 {dimension_numbers = #tpu.dot_dimension_numbers<[1], [0], [0], [1], [0, 0, 1, 1], [], []>} : vector<2x32xf32>, vector<32x32xf32>, vector<2x32xf32> -> vector<2x32xf32>
    %10 = arith.addf %8, %9 : vector<2x32xf32>
    %11 = math.tanh %10 : vector<2x32xf32>
    %12 = vector.extract_strided_slice %6 {offsets = [2, 0], sizes = [2, 32], strides = [1, 1]} : vector<16x32xf32> to vector<2x32xf32>
    %cst_9 = arith.constant dense<0.000000e+00> : vector<2x32xf32>
    %13 = tpu.matmul %11, %1, %cst_9 {dimension_numbers = #tpu.dot_dimension_numbers<[1], [0], [0], [1], [0, 0, 1, 1], [], []>} : vector<2x32xf32>, vector<32x32xf32>, vector<2x32xf32> -> vector<2x32xf32>
    %14 = arith.addf %12, %13 : vector<2x32xf32>
    %15 = math.tanh %14 : vector<2x32xf32>
    %16 = vector.extract_strided_slice %6 {offsets = [4, 0], sizes = [2, 32], strides = [1, 1]} : vector<16x32xf32> to vector<2x32xf32>
    %cst_10 = arith.constant dense<0.000000e+00> : vector<2x32xf32>
    %17 = tpu.matmul %15, %1, %cst_10 {dimension_numbers = #tpu.dot_dimension_numbers<[1], [0], [0], [1], [0, 0, 1, 1], [], []>} : vector<2x32xf32>, vector<32x32xf32>, vector<2x32xf32> -> vector<2x32xf32>
    %18 = arith.addf %16, %17 : vector<2x32xf32>
    %19 = math.tanh %18 : vector<2x32xf32>
    %20 = vector.extract_strided_slice %6 {offsets = [6, 0], sizes = [2, 32], strides = [1, 1]} : vector<16x32xf32> to vector<2x32xf32>
    %cst_11 = arith.constant dense<0.000000e+00> : vector<2x32xf32>
    %21 = tpu.matmul %19, %1, %cst_11 {dimension_numbers = #tpu.dot_dimension_numbers<[1], [0], [0], [1], [0, 0, 1, 1], [], []>} : vector<2x32xf32>, vector<32x32xf32>, vector<2x32xf32> -> vector<2x32xf32>
    %22 = arith.addf %20, %21 : vector<2x32xf32>
    %23 = math.tanh %22 : vector<2x32xf32>
    %24 = vector.extract_strided_slice %6 {offsets = [8, 0], sizes = [2, 32], strides = [1, 1]} : vector<16x32xf32> to vector<2x32xf32>
    %cst_12 = arith.constant dense<0.000000e+00> : vector<2x32xf32>
    %25 = tpu.matmul %23, %1, %cst_12 {dimension_numbers = #tpu.dot_dimension_numbers<[1], [0], [0], [1], [0, 0, 1, 1], [], []>} : vector<2x32xf32>, vector<32x32xf32>, vector<2x32xf32> -> vector<2x32xf32>
    %26 = arith.addf %24, %25 : vector<2x32xf32>
    %27 = math.tanh %26 : vector<2x32xf32>
    %28 = vector.extract_strided_slice %6 {offsets = [10, 0], sizes = [2, 32], strides = [1, 1]} : vector<16x32xf32> to vector<2x32xf32>
    %cst_13 = arith.constant dense<0.000000e+00> : vector<2x32xf32>
    %29 = tpu.matmul %27, %1, %cst_13 {dimension_numbers = #tpu.dot_dimension_numbers<[1], [0], [0], [1], [0, 0, 1, 1], [], []>} : vector<2x32xf32>, vector<32x32xf32>, vector<2x32xf32> -> vector<2x32xf32>
    %30 = arith.addf %28, %29 : vector<2x32xf32>
    %31 = math.tanh %30 : vector<2x32xf32>
    %32 = vector.extract_strided_slice %6 {offsets = [12, 0], sizes = [2, 32], strides = [1, 1]} : vector<16x32xf32> to vector<2x32xf32>
    %cst_14 = arith.constant dense<0.000000e+00> : vector<2x32xf32>
    %33 = tpu.matmul %31, %1, %cst_14 {dimension_numbers = #tpu.dot_dimension_numbers<[1], [0], [0], [1], [0, 0, 1, 1], [], []>} : vector<2x32xf32>, vector<32x32xf32>, vector<2x32xf32> -> vector<2x32xf32>
    %34 = arith.addf %32, %33 : vector<2x32xf32>
    %35 = math.tanh %34 : vector<2x32xf32>
    %36 = vector.extract_strided_slice %6 {offsets = [14, 0], sizes = [2, 32], strides = [1, 1]} : vector<16x32xf32> to vector<2x32xf32>
    %cst_15 = arith.constant dense<0.000000e+00> : vector<2x32xf32>
    %37 = tpu.matmul %35, %1, %cst_15 {dimension_numbers = #tpu.dot_dimension_numbers<[1], [0], [0], [1], [0, 0, 1, 1], [], []>} : vector<2x32xf32>, vector<32x32xf32>, vector<2x32xf32> -> vector<2x32xf32>
    %38 = arith.addf %36, %37 : vector<2x32xf32>
    %39 = math.tanh %38 : vector<2x32xf32>
    %c0_16 = arith.constant 0 : index
    %c0_17 = arith.constant 0 : index
    %40 = vector.load %arg4[%c0_16, %c0_17] : memref<32x128xf32, #tpu.memory_space<vmem>>, vector<32x128xf32>
    %cst_18 = arith.constant dense<0.000000e+00> : vector<2x128xf32>
    %41 = tpu.matmul %39, %40, %cst_18 {dimension_numbers = #tpu.dot_dimension_numbers<[1], [0], [0], [1], [0, 0, 1, 1], [], []>} : vector<2x32xf32>, vector<32x128xf32>, vector<2x128xf32> -> vector<2x128xf32>
    %c0_19 = arith.constant 0 : index
    %c0_20 = arith.constant 0 : index
    %42 = vector.load %arg5[%c0_19, %c0_20] : memref<1x128xf32, #tpu.memory_space<vmem>>, vector<1x128xf32>
    %43 = vector.broadcast %42 : vector<1x128xf32> to vector<2x128xf32>
    %44 = arith.addf %41, %43 : vector<2x128xf32>
    %c0_21 = arith.constant 0 : index
    %c0_22 = arith.constant 0 : index
    %45 = vector.load %arg6[%c0_21, %c0_22] : memref<2x128xf32, #tpu.memory_space<vmem>>, vector<2x128xf32>
    tpu.vector_store %arg6[%c0_21, %c0_22], %44 {strides = array<i32>} : memref<2x128xf32, #tpu.memory_space<vmem>>, vector<2x128xf32>,
    return
  }
}

</mosaic_0001>

<llo_original>
// kernel: tpu_custom_call.1
$region0: #{tpu_custom_call.1}
  #allocation0 [shape = 'u32[]', space=smem, size = 0x4, offset = 0x4, fixed_abs, tag = 'smem constant byte address 0x4 - core index']
  #allocation1 [shape = 'u32[144,128]{1,0:T(1,128)}', space=vmem, size = 0x12000, scoped, tag = 'internal scratch']
  %s0 = inlined_call_operand.hbm [shape: f32[16,16], index: 0, kind: input, shape index: {}]
  %s1 = inlined_call_operand.hbm [shape: f32[16,32], index: 1, kind: input, shape index: {}]
  %s2 = inlined_call_operand.hbm [shape: f32[32,32], index: 2, kind: input, shape index: {}]
  %s3 = inlined_call_operand.vmem [shape: f32[1,32], index: 3, kind: input, shape index: {}]
  %s4 = inlined_call_operand.hbm [shape: f32[32,128], index: 4, kind: input, shape index: {}]
  %s5 = inlined_call_operand.vmem [shape: f32[1,128], index: 5, kind: input, shape index: {}]
  %s6 = inlined_call_operand.hbm [shape: f32[2,128], index: 6, kind: output, shape index: {}]
  %s7 = sld [smem:[#allocation0]]
  $region50: #{tpu_custom_call.1} parent=0
    _
  %s9 = ssub.s32 1, %s7
  %s10 = scalar_select 0, %s9, %s7
  $region1: #{tpu_custom_call.1} parent=0
    #allocation2 [shape = 'u8[8192]{0}', space=vmem, size = 0x2000, scoped, tag = 'input window, operand 0, single buffered']
    #allocation3 [shape = 's32[1]{0}', space=sflag, size = 0x4, scoped, tag = 'scoped memory for tpu_custom_call.1']
    #allocation4 [shape = 's32[1]{0}', space=sflag, size = 0x4, scoped, tag = 'scoped memory for tpu_custom_call.1']
    #allocation5 [shape = 'u8[8192]{0}', space=vmem, size = 0x2000, scoped, tag = 'input window, operand 1, single buffered']
    #allocation6 [shape = 's32[1]{0}', space=sflag, size = 0x4, scoped, tag = 'scoped memory for tpu_custom_call.1']
    #allocation7 [shape = 'u8[16384]{0}', space=vmem, size = 0x4000, scoped, tag = 'input window, operand 2, single buffered']
    #allocation8 [shape = 'u8[16384]{0}', space=vmem, size = 0x4000, scoped, tag = 'input window, operand 4, single buffered']
    #allocation9 [shape = 's32[1]{0}', space=sflag, size = 0x4, scoped, tag = 'scoped memory for tpu_custom_call.1']
    #allocation10 [shape = 'u8[1024]{0}', space=vmem, size = 0x400, scoped, tag = 'output window, operand 0, single buffered']
    %11 = vsyncpa [#allocation3], 0
    %12 = vsyncpa [#allocation6], 0
    %13 = vsyncpa [#allocation9], 0
    %14 = vsyncpa [#allocation4], 0
    // Predicated region
    $region2: #{tpu_custom_call.1} parent=1 // pred_check
      _
    $region3: #{tpu_custom_call.1} parent=1 // pred_check_branch
      %16 = sbr.rel (0) target = $region5
    $region4: #{tpu_custom_call.1} parent=1 // pred_region
      %s18 = ssub.s32 256, 256
      %19 = vsyncadd [#allocation3], %s18
      %s20 = sshll.u32 [#allocation2], 4
      %s21 = int_to_ptr.vmem [resolvable:$true] %s20
      %26 = dma.hbm_to_vmem [thread:$0]  %s0, 256, %s21, [#allocation3], 128, 128, 8
    $region5: #{tpu_custom_call.1} parent=1 // pred_fallthru
      _
    // Predicated region
    $region6: #{tpu_custom_call.1} parent=1 // pred_check
      _
    $region7: #{tpu_custom_call.1} parent=1 // pred_check_branch
      %28 = sbr.rel (0) target = $region9
    $region8: #{tpu_custom_call.1} parent=1 // pred_region
      %s30 = ssub.s32 256, 256
      %31 = vsyncadd [#allocation6], %s30
      %s32 = sshll.u32 [#allocation5], 4
      %s33 = int_to_ptr.vmem [resolvable:$true] %s32
      %38 = dma.hbm_to_vmem [thread:$0]  %s1, 256, %s33, [#allocation6], 128, 128, 8
    $region9: #{tpu_custom_call.1} parent=1 // pred_fallthru
      _
    // Predicated region
    $region10: #{tpu_custom_call.1} parent=1 // pred_check
      _
    $region11: #{tpu_custom_call.1} parent=1 // pred_check_branch
      %40 = sbr.rel (0) target = $region13
    $region12: #{tpu_custom_call.1} parent=1 // pred_region
      %s42 = ssub.s32 512, 512
      %43 = vsyncadd [#allocation6], %s42
      %s44 = sshll.u32 [#allocation7], 4
      %s45 = int_to_ptr.vmem [resolvable:$true] %s44
      %50 = dma.hbm_to_vmem [thread:$0]  %s2, 512, %s45, [#allocation6], 128, 128, 8
    $region13: #{tpu_custom_call.1} parent=1 // pred_fallthru
      _
    // Predicated region
    $region14: #{tpu_custom_call.1} parent=1 // pred_check
      _
    $region15: #{tpu_custom_call.1} parent=1 // pred_check_branch
      %52 = sbr.rel (0) target = $region17
    $region16: #{tpu_custom_call.1} parent=1 // pred_region
      _
    $region17: #{tpu_custom_call.1} parent=1 // pred_fallthru
      _
    // Predicated region
    $region18: #{tpu_custom_call.1} parent=1 // pred_check
      _
    $region19: #{tpu_custom_call.1} parent=1 // pred_check_branch
      %54 = sbr.rel (0) target = $region21
    $region20: #{tpu_custom_call.1} parent=1 // pred_region
      %s56 = ssub.s32 512, 512
      %57 = vsyncadd [#allocation9], %s56
      %s58 = sshll.u32 [#allocation8], 4
      %s59 = int_to_ptr.vmem [resolvable:$true] %s58
      %64 = dma.hbm_to_vmem [thread:$0]  %s4, 512, %s59, [#allocation9], 128, 128, 8
    $region21: #{tpu_custom_call.1} parent=1 // pred_fallthru
      _
    // Predicated region
    $region22: #{tpu_custom_call.1} parent=1 // pred_check
      _
    $region23: #{tpu_custom_call.1} parent=1 // pred_check_branch
      %66 = sbr.rel (0) target = $region25
    $region24: #{tpu_custom_call.1} parent=1 // pred_region
      _
    $region25: #{tpu_custom_call.1} parent=1 // pred_fallthru
      _
    // Predicated region
    $region26: #{tpu_custom_call.1} parent=1 // pred_check
      _
    $region27: #{tpu_custom_call.1} parent=1 // pred_check_branch
      %68 = sbr.rel (0) target = $region29
    $region28: #{tpu_custom_call.1} parent=1 // pred_region
      %69 = dma.done [#allocation3], 256
    $region29: #{tpu_custom_call.1} parent=1 // pred_fallthru
      _
    // Predicated region
    $region30: #{tpu_custom_call.1} parent=1 // pred_check
      _
    $region31: #{tpu_custom_call.1} parent=1 // pred_check_branch
      %71 = sbr.rel (0) target = $region33
    $region32: #{tpu_custom_call.1} parent=1 // pred_region
      %72 = dma.done [#allocation6], 256
    $region33: #{tpu_custom_call.1} parent=1 // pred_fallthru
      _
    // Predicated region
    $region34: #{tpu_custom_call.1} parent=1 // pred_check
      _
    $region35: #{tpu_custom_call.1} parent=1 // pred_check_branch
      %74 = sbr.rel (0) target = $region37
    $region36: #{tpu_custom_call.1} parent=1 // pred_region
      %75 = dma.done [#allocation6], 512
    $region37: #{tpu_custom_call.1} parent=1 // pred_fallthru
      _
    // Predicated region
    $region38: #{tpu_custom_call.1} parent=1 // pred_check
      _
    $region39: #{tpu_custom_call.1} parent=1 // pred_check_branch
      %77 = sbr.rel (0) target = $region41
    $region40: #{tpu_custom_call.1} parent=1 // pred_region
      %78 = dma.done [#allocation9], 512
    $region41: #{tpu_custom_call.1} parent=1 // pred_fallthru
      _
    %v79 = vld [vmem:[#allocation2] sm:$0xff]
    %v80 = vld [vmem:[#allocation2 + $0x8] sm:$0xff]
    %v81 = vld [vmem:[#allocation7] sm:$0xff]
    %v82 = vld [vmem:[#allocation7 + $0x8] sm:$0xff]
    %v83 = vld [vmem:[#allocation7 + $0x10] sm:$0xff]
    %v84 = vld [vmem:[#allocation7 + $0x18] sm:$0xff]
    %v85 = vld [vmem:[#allocation5] sm:$0xff]
    %v86 = vld [vmem:[#allocation5 + $0x8] sm:$0xff]
    %v87 = vld [vmem:[%s3] sm:$0x1]
    %v89 = vlaneseq
    %v90 = vshrl.u32 %v89, 7
    %v91 = vsub.s32 0, %v90
    %v92 = vrot.slane %v87, %v91
    %vm94 = vcmask 130048
    %v96 = vsel %vm94, %v79, 0
    %v99 = vsel %vm94, %v80, 0
    %101 = vmatprep.subr.mxu0 0.0
    %102 = vmatpush1.msra.mxu0 %v85
    %103 = vmatprep.subr.mxu0 0.0
    %104 = vmatpush1.msra.mxu0 %v86
    %105 = vmatprep.subr.mxu0 0.0
    %106 = vmatpush1.msra.mxu0 0.0
    %107 = vmatprep.subr.mxu0 0.0
    %108 = vmatpush1.msra.mxu0 0.0
    %109 = vmatprep.subr.mxu0 0.0
    %110 = vmatpush1.msra.mxu0 0.0
    %111 = vmatprep.subr.mxu0 0.0
    %112 = vmatpush1.msra.mxu0 0.0
    %113 = vmatprep.subr.mxu0 0.0
    %114 = vmatpush1.msra.mxu0 0.0
    %115 = vmatprep.subr.mxu0 0.0
    %116 = vmatpush1.msra.mxu0 0.0
    %117 = vmatprep.subr.mxu0 0.0
    %118 = vmatpush1.msra.mxu0 0.0
    %119 = vmatprep.subr.mxu0 0.0
    %120 = vmatpush1.msra.mxu0 0.0
    %121 = vmatprep.subr.mxu0 0.0
    %122 = vmatpush1.msra.mxu0 0.0
    %123 = vmatprep.subr.mxu0 0.0
    %124 = vmatpush1.msra.mxu0 0.0
    %125 = vmatprep.subr.mxu0 0.0
    %126 = vmatpush1.msra.mxu0 0.0
    %127 = vmatprep.subr.mxu0 0.0
    %128 = vmatpush1.msra.mxu0 0.0
    %129 = vmatprep.subr.mxu0 0.0
    %130 = vmatpush1.msra.mxu0 0.0
    %131 = vmatprep.subr.mxu0 0.0
    %132 = vmatpush1.msra.mxu0 0.0
    %133 = vmatprep.subr.mxu0 0.0
    %134 = vmatpush1.msra.mxu0 0.0
    %135 = vmatprep.subr.mxu0 0.0
    %136 = vmatpush1.msra.mxu0 0.0
    %137 = vmatprep.subr.mxu0 0.0
    %138 = vmatpush1.msra.mxu0 0.0
    %139 = vmatprep.subr.mxu0 0.0
    %140 = vmatpush1.msra.mxu0 0.0
    %141 = vmatprep.subr.mxu0 0.0
    %142 = vmatpush1.msra.mxu0 0.0
    %143 = vmatprep.subr.mxu0 0.0
    %144 = vmatpush1.msra.mxu0 0.0
    %145 = vmatprep.subr.mxu0 0.0
    %146 = vmatpush1.msra.mxu0 0.0
    %147 = vmatprep.subr.mxu0 0.0
    %148 = vmatpush1.msra.mxu0 0.0
    %149 = vmatprep.subr.mxu0 0.0
    %150 = vmatpush1.msra.mxu0 0.0
    %151 = vmatprep.subr.mxu0 0.0
    %152 = vmatpush1.msra.mxu0 0.0
    %153 = vmatprep.subr.mxu0 0.0
    %154 = vmatpush1.msra.mxu0 0.0
    %155 = vmatprep.subr.mxu0 0.0
    %156 = vmatpush1.msra.mxu0 0.0
    %157 = vmatprep.subr.mxu0 0.0
    %158 = vmatpush1.msra.mxu0 0.0
    %159 = vmatprep.subr.mxu0 0.0
    %160 = vmatpush1.msra.mxu0 0.0
    %161 = vmatprep.subr.mxu0 0.0
    %162 = vmatpush1.msra.mxu0 0.0
    %163 = vmatprep.subr.mxu0 0.0
    %164 = vmatpush1.msra.mxu0 0.0
    %165 = vmatprep.mubr.f32.mxu0 0.0
    %166 = vmatmul.mubr.f32.gmra.mrb[0].mxu0 %v96
    %v167 = vpop.f32.mrb[0].mxu0
    %v168 = vadd.f32 %v92, %v167
    %v169 = vpop.f32.mrb[0].mxu0
    %170 = vmatprep.mubr.f32.mxu0 0.0
    %171 = vmatmul.mubr.f32.gmra.mrb[0].mxu0 %v99
    %v172 = vpop.f32.mrb[0].mxu0
    %v173 = vadd.f32 %v92, %v172
    %v174 = vpop.f32.mrb[0].mxu0
    %175 = vdwg.mxu0
    %vm176 = vcmask 261120
    %v178 = vsel %vm176, 0.0, 0
    %180 = vmatprep.subr.mxu0 0.0
    %181 = vmatpush1.msra.mxu0 %v81
    %182 = vmatprep.subr.mxu0 0.0
    %183 = vmatpush1.msra.mxu0 %v82
    %184 = vmatprep.subr.mxu0 0.0
    %185 = vmatpush1.msra.mxu0 %v83
    %186 = vmatprep.subr.mxu0 0.0
    %187 = vmatpush1.msra.mxu0 %v84
    %188 = vmatprep.subr.mxu0 0.0
    %189 = vmatpush1.msra.mxu0 0.0
    %190 = vmatprep.subr.mxu0 0.0
    %191 = vmatpush1.msra.mxu0 0.0
    %192 = vmatprep.subr.mxu0 0.0
    %193 = vmatpush1.msra.mxu0 0.0
    %194 = vmatprep.subr.mxu0 0.0
    %195 = vmatpush1.msra.mxu0 0.0
    %196 = vmatprep.subr.mxu0 0.0
    %197 = vmatpush1.msra.mxu0 0.0
    %198 = vmatprep.subr.mxu0 0.0
    %199 = vmatpush1.msra.mxu0 0.0
    %200 = vmatprep.subr.mxu0 0.0
    %201 = vmatpush1.msra.mxu0 0.0
    %202 = vmatprep.subr.mxu0 0.0
    %203 = vmatpush1.msra.mxu0 0.0
    %204 = vmatprep.subr.mxu0 0.0
    %205 = vmatpush1.msra.mxu0 0.0
    %206 = vmatprep.subr.mxu0 0.0
    %207 = vmatpush1.msra.mxu0 0.0
    %208 = vmatprep.subr.mxu0 0.0
    %209 = vmatpush1.msra.mxu0 0.0
    %210 = vmatprep.subr.mxu0 0.0
    %211 = vmatpush1.msra.mxu0 0.0
    %212 = vmatprep.subr.mxu0 0.0
    %213 = vmatpush1.msra.mxu0 0.0
    %214 = vmatprep.subr.mxu0 0.0
    %215 = vmatpush1.msra.mxu0 0.0
    %216 = vmatprep.subr.mxu0 0.0
    %217 = vmatpush1.msra.mxu0 0.0
    %218 = vmatprep.subr.mxu0 0.0
    %219 = vmatpush1.msra.mxu0 0.0
    %220 = vmatprep.subr.mxu0 0.0
    %221 = vmatpush1.msra.mxu0 0.0
    %222 = vmatprep.subr.mxu0 0.0
    %223 = vmatpush1.msra.mxu0 0.0
    %224 = vmatprep.subr.mxu0 0.0
    %225 = vmatpush1.msra.mxu0 0.0
    %226 = vmatprep.subr.mxu0 0.0
    %227 = vmatpush1.msra.mxu0 0.0
    %228 = vmatprep.subr.mxu0 0.0
    %229 = vmatpush1.msra.mxu0 0.0
    %230 = vmatprep.subr.mxu0 0.0
    %231 = vmatpush1.msra.mxu0 0.0
    %232 = vmatprep.subr.mxu0 0.0
    %233 = vmatpush1.msra.mxu0 0.0
    %234 = vmatprep.subr.mxu0 0.0
    %235 = vmatpush1.msra.mxu0 0.0
    %236 = vmatprep.subr.mxu0 0.0
    %237 = vmatpush1.msra.mxu0 0.0
    %238 = vmatprep.subr.mxu0 0.0
    %239 = vmatpush1.msra.mxu0 0.0
    %240 = vmatprep.subr.mxu0 0.0
    %241 = vmatpush1.msra.mxu0 0.0
    %242 = vmatprep.subr.mxu0 0.0
    %243 = vmatpush1.msra.mxu0 0.0
    %244 = vmatprep.mubr.f32.mxu0 0.0
    %245 = vmatmul.mubr.f32.gmra.mrb[0].mxu0 %v178
    %v246 = vpop.f32.mrb[0].mxu0
    %v247 = vadd.f32 0.0, %v246
    %v248 = vpop.f32.mrb[0].mxu0
    %249 = vdwg.mxu0
    %v250 = vadd.f32 %v168, %v247
    %v251 = vtanh.pop %v250
    %v253 = vsel %vm176, %v251, 0
    %255 = vmatprep.subr.mxu0 0.0
    %256 = vmatpush1.msra.mxu0 %v81
    %257 = vmatprep.subr.mxu0 0.0
    %258 = vmatpush1.msra.mxu0 %v82
    %259 = vmatprep.subr.mxu0 0.0
    %260 = vmatpush1.msra.mxu0 %v83
    %261 = vmatprep.subr.mxu0 0.0
    %262 = vmatpush1.msra.mxu0 %v84
    %263 = vmatprep.subr.mxu0 0.0
    %264 = vmatpush1.msra.mxu0 0.0
    %265 = vmatprep.subr.mxu0 0.0
    %266 = vmatpush1.msra.mxu0 0.0
    %267 = vmatprep.subr.mxu0 0.0
    %268 = vmatpush1.msra.mxu0 0.0
    %269 = vmatprep.subr.mxu0 0.0
    %270 = vmatpush1.msra.mxu0 0.0
    %271 = vmatprep.subr.mxu0 0.0
    %272 = vmatpush1.msra.mxu0 0.0
    %273 = vmatprep.subr.mxu0 0.0
    %274 = vmatpush1.msra.mxu0 0.0
    %275 = vmatprep.subr.mxu0 0.0
    %276 = vmatpush1.msra.mxu0 0.0
    %277 = vmatprep.subr.mxu0 0.0
    %278 = vmatpush1.msra.mxu0 0.0
    %279 = vmatprep.subr.mxu0 0.0
    %280 = vmatpush1.msra.mxu0 0.0
    %281 = vmatprep.subr.mxu0 0.0
    %282 = vmatpush1.msra.mxu0 0.0
    %283 = vmatprep.subr.mxu0 0.0
    %284 = vmatpush1.msra.mxu0 0.0
    %285 = vmatprep.subr.mxu0 0.0
    %286 = vmatpush1.msra.mxu0 0.0
    %287 = vmatprep.subr.mxu0 0.0
    %288 = vmatpush1.msra.mxu0 0.0
    %289 = vmatprep.subr.mxu0 0.0
    %290 = vmatpush1.msra.mxu0 0.0
    %291 = vmatprep.subr.mxu0 0.0
    %292 = vmatpush1.msra.mxu0 0.0
    %293 = vmatprep.subr.mxu0 0.0
    %294 = vmatpush1.msra.mxu0 0.0
    %295 = vmatprep.subr.mxu0 0.0
    %296 = vmatpush1.msra.mxu0 0.0
    %297 = vmatprep.subr.mxu0 0.0
    %298 = vmatpush1.msra.mxu0 0.0
    %299 = vmatprep.subr.mxu0 0.0
    %300 = vmatpush1.msra.mxu0 0.0
    %301 = vmatprep.subr.mxu0 0.0
    %302 = vmatpush1.msra.mxu0 0.0
    %303 = vmatprep.subr.mxu0 0.0
    %304 = vmatpush1.msra.mxu0 0.0
    %305 = vmatprep.subr.mxu0 0.0
    %306 = vmatpush1.msra.mxu0 0.0
    %307 = vmatprep.subr.mxu0 0.0
    %308 = vmatpush1.msra.mxu0 0.0
    %309 = vmatprep.subr.mxu0 0.0
    %310 = vmatpush1.msra.mxu0 0.0
    %311 = vmatprep.subr.mxu0 0.0
    %312 = vmatpush1.msra.mxu0 0.0
    %313 = vmatprep.subr.mxu0 0.0
    %314 = vmatpush1.msra.mxu0 0.0
    %315 = vmatprep.subr.mxu0 0.0
    %316 = vmatpush1.msra.mxu0 0.0
    %317 = vmatprep.subr.mxu0 0.0
    %318 = vmatpush1.msra.mxu0 0.0
    %319 = vmatprep.mubr.f32.mxu0 0.0
    %320 = vmatmul.mubr.f32.gmra.mrb[0].mxu0 %v253
    %v321 = vpop.f32.mrb[0].mxu0
    %v322 = vadd.f32 0.0, %v321
    %v323 = vpop.f32.mrb[0].mxu0
    %324 = vdwg.mxu0
    %v326 = vrot.slane %v322, 6
    %v328 = vadd.f32 %v168, %v326
    %v329 = vtanh.pop %v328
    %v331 = vrot.slane %v329, 2
    %v332 = vsel %vm176, %v331, 0
    %334 = vmatprep.subr.mxu0 0.0
    %335 = vmatpush1.msra.mxu0 %v81
    %336 = vmatprep.subr.mxu0 0.0
    %337 = vmatpush1.msra.mxu0 %v82
    %338 = vmatprep.subr.mxu0 0.0
    %339 = vmatpush1.msra.mxu0 %v83
    %340 = vmatprep.subr.mxu0 0.0
    %341 = vmatpush1.msra.mxu0 %v84
    %342 = vmatprep.subr.mxu0 0.0
    %343 = vmatpush1.msra.mxu0 0.0
    %344 = vmatprep.subr.mxu0 0.0
    %345 = vmatpush1.msra.mxu0 0.0
    %346 = vmatprep.subr.mxu0 0.0
    %347 = vmatpush1.msra.mxu0 0.0
    %348 = vmatprep.subr.mxu0 0.0
    %349 = vmatpush1.msra.mxu0 0.0
    %350 = vmatprep.subr.mxu0 0.0
    %351 = vmatpush1.msra.mxu0 0.0
    %352 = vmatprep.subr.mxu0 0.0
    %353 = vmatpush1.msra.mxu0 0.0
    %354 = vmatprep.subr.mxu0 0.0
    %355 = vmatpush1.msra.mxu0 0.0
    %356 = vmatprep.subr.mxu0 0.0
    %357 = vmatpush1.msra.mxu0 0.0
    %358 = vmatprep.subr.mxu0 0.0
    %359 = vmatpush1.msra.mxu0 0.0
    %360 = vmatprep.subr.mxu0 0.0
    %361 = vmatpush1.msra.mxu0 0.0
    %362 = vmatprep.subr.mxu0 0.0
    %363 = vmatpush1.msra.mxu0 0.0
    %364 = vmatprep.subr.mxu0 0.0
    %365 = vmatpush1.msra.mxu0 0.0
    %366 = vmatprep.subr.mxu0 0.0
    %367 = vmatpush1.msra.mxu0 0.0
    %368 = vmatprep.subr.mxu0 0.0
    %369 = vmatpush1.msra.mxu0 0.0
    %370 = vmatprep.subr.mxu0 0.0
    %371 = vmatpush1.msra.mxu0 0.0
    %372 = vmatprep.subr.mxu0 0.0
    %373 = vmatpush1.msra.mxu0 0.0
    %374 = vmatprep.subr.mxu0 0.0
    %375 = vmatpush1.msra.mxu0 0.0
    %376 = vmatprep.subr.mxu0 0.0
    %377 = vmatpush1.msra.mxu0 0.0
    %378 = vmatprep.subr.mxu0 0.0
    %379 = vmatpush1.msra.mxu0 0.0
    %380 = vmatprep.subr.mxu0 0.0
    %381 = vmatpush1.msra.mxu0 0.0
    %382 = vmatprep.subr.mxu0 0.0
    %383 = vmatpush1.msra.mxu0 0.0
    %384 = vmatprep.subr.mxu0 0.0
    %385 = vmatpush1.msra.mxu0 0.0
    %386 = vmatprep.subr.mxu0 0.0
    %387 = vmatpush1.msra.mxu0 0.0
    %388 = vmatprep.subr.mxu0 0.0
    %389 = vmatpush1.msra.mxu0 0.0
    %390 = vmatprep.subr.mxu0 0.0
    %391 = vmatpush1.msra.mxu0 0.0
    %392 = vmatprep.subr.mxu0 0.0
    %393 = vmatpush1.msra.mxu0 0.0
    %394 = vmatprep.subr.mxu0 0.0
    %395 = vmatpush1.msra.mxu0 0.0
    %396 = vmatprep.subr.mxu0 0.0
    %397 = vmatpush1.msra.mxu0 0.0
    %398 = vmatprep.mubr.f32.mxu0 0.0
    %399 = vmatmul.mubr.f32.gmra.mrb[0].mxu0 %v332
    %v400 = vpop.f32.mrb[0].mxu0
    %v401 = vadd.f32 0.0, %v400
    %v402 = vpop.f32.mrb[0].mxu0
    %403 = vdwg.mxu0
    %v405 = vrot.slane %v401, 4
    %v407 = vadd.f32 %v168, %v405
    %v408 = vtanh.pop %v407
    %v410 = vrot.slane %v408, 4
    %v411 = vsel %vm176, %v410, 0
    %413 = vmatprep.subr.mxu0 0.0
    %414 = vmatpush1.msra.mxu0 %v81
    %415 = vmatprep.subr.mxu0 0.0
    %416 = vmatpush1.msra.mxu0 %v82
    %417 = vmatprep.subr.mxu0 0.0
    %418 = vmatpush1.msra.mxu0 %v83
    %419 = vmatprep.subr.mxu0 0.0
    %420 = vmatpush1.msra.mxu0 %v84
    %421 = vmatprep.subr.mxu0 0.0
    %422 = vmatpush1.msra.mxu0 0.0
    %423 = vmatprep.subr.mxu0 0.0
    %424 = vmatpush1.msra.mxu0 0.0
    %425 = vmatprep.subr.mxu0 0.0
    %426 = vmatpush1.msra.mxu0 0.0
    %427 = vmatprep.subr.mxu0 0.0
    %428 = vmatpush1.msra.mxu0 0.0
    %429 = vmatprep.subr.mxu0 0.0
    %430 = vmatpush1.msra.mxu0 0.0
    %431 = vmatprep.subr.mxu0 0.0
    %432 = vmatpush1.msra.mxu0 0.0
    %433 = vmatprep.subr.mxu0 0.0
    %434 = vmatpush1.msra.mxu0 0.0
    %435 = vmatprep.subr.mxu0 0.0
    %436 = vmatpush1.msra.mxu0 0.0
    %437 = vmatprep.subr.mxu0 0.0
    %438 = vmatpush1.msra.mxu0 0.0
    %439 = vmatprep.subr.mxu0 0.0
    %440 = vmatpush1.msra.mxu0 0.0
    %441 = vmatprep.subr.mxu0 0.0
    %442 = vmatpush1.msra.mxu0 0.0
    %443 = vmatprep.subr.mxu0 0.0
    %444 = vmatpush1.msra.mxu0 0.0
    %445 = vmatprep.subr.mxu0 0.0
    %446 = vmatpush1.msra.mxu0 0.0
    %447 = vmatprep.subr.mxu0 0.0
    %448 = vmatpush1.msra.mxu0 0.0
    %449 = vmatprep.subr.mxu0 0.0
    %450 = vmatpush1.msra.mxu0 0.0
    %451 = vmatprep.subr.mxu0 0.0
    %452 = vmatpush1.msra.mxu0 0.0
    %453 = vmatprep.subr.mxu0 0.0
    %454 = vmatpush1.msra.mxu0 0.0
    %455 = vmatprep.subr.mxu0 0.0
    %456 = vmatpush1.msra.mxu0 0.0
    %457 = vmatprep.subr.mxu0 0.0
    %458 = vmatpush1.msra.mxu0 0.0
    %459 = vmatprep.subr.mxu0 0.0
    %460 = vmatpush1.msra.mxu0 0.0
    %461 = vmatprep.subr.mxu0 0.0
    %462 = vmatpush1.msra.mxu0 0.0
    %463 = vmatprep.subr.mxu0 0.0
    %464 = vmatpush1.msra.mxu0 0.0
    %465 = vmatprep.subr.mxu0 0.0
    %466 = vmatpush1.msra.mxu0 0.0
    %467 = vmatprep.subr.mxu0 0.0
    %468 = vmatpush1.msra.mxu0 0.0
    %469 = vmatprep.subr.mxu0 0.0
    %470 = vmatpush1.msra.mxu0 0.0
    %471 = vmatprep.subr.mxu0 0.0
    %472 = vmatpush1.msra.mxu0 0.0
    %473 = vmatprep.subr.mxu0 0.0
    %474 = vmatpush1.msra.mxu0 0.0
    %475 = vmatprep.subr.mxu0 0.0
    %476 = vmatpush1.msra.mxu0 0.0
    %477 = vmatprep.mubr.f32.mxu0 0.0
    %478 = vmatmul.mubr.f32.gmra.mrb[0].mxu0 %v411
    %v479 = vpop.f32.mrb[0].mxu0
    %v480 = vadd.f32 0.0, %v479
    %v481 = vpop.f32.mrb[0].mxu0
    %482 = vdwg.mxu0
    %v484 = vrot.slane %v480, 2
    %v486 = vadd.f32 %v168, %v484
    %v487 = vtanh.pop %v486
    %v489 = vrot.slane %v487, 6
    %v490 = vsel %vm176, %v489, 0
    %492 = vmatprep.subr.mxu0 0.0
    %493 = vmatpush1.msra.mxu0 %v81
    %494 = vmatprep.subr.mxu0 0.0
    %495 = vmatpush1.msra.mxu0 %v82
    %496 = vmatprep.subr.mxu0 0.0
    %497 = vmatpush1.msra.mxu0 %v83
    %498 = vmatprep.subr.mxu0 0.0
    %499 = vmatpush1.msra.mxu0 %v84
    %500 = vmatprep.subr.mxu0 0.0
    %501 = vmatpush1.msra.mxu0 0.0
    %502 = vmatprep.subr.mxu0 0.0
    %503 = vmatpush1.msra.mxu0 0.0
    %504 = vmatprep.subr.mxu0 0.0
    %505 = vmatpush1.msra.mxu0 0.0
    %506 = vmatprep.subr.mxu0 0.0
    %507 = vmatpush1.msra.mxu0 0.0
    %508 = vmatprep.subr.mxu0 0.0
    %509 = vmatpush1.msra.mxu0 0.0
    %510 = vmatprep.subr.mxu0 0.0
    %511 = vmatpush1.msra.mxu0 0.0
    %512 = vmatprep.subr.mxu0 0.0
    %513 = vmatpush1.msra.mxu0 0.0
    %514 = vmatprep.subr.mxu0 0.0
    %515 = vmatpush1.msra.mxu0 0.0
    %516 = vmatprep.subr.mxu0 0.0
    %517 = vmatpush1.msra.mxu0 0.0
    %518 = vmatprep.subr.mxu0 0.0
    %519 = vmatpush1.msra.mxu0 0.0
    %520 = vmatprep.subr.mxu0 0.0
    %521 = vmatpush1.msra.mxu0 0.0
    %522 = vmatprep.subr.mxu0 0.0
    %523 = vmatpush1.msra.mxu0 0.0
    %524 = vmatprep.subr.mxu0 0.0
    %525 = vmatpush1.msra.mxu0 0.0
    %526 = vmatprep.subr.mxu0 0.0
    %527 = vmatpush1.msra.mxu0 0.0
    %528 = vmatprep.subr.mxu0 0.0
    %529 = vmatpush1.msra.mxu0 0.0
    %530 = vmatprep.subr.mxu0 0.0
    %531 = vmatpush1.msra.mxu0 0.0
    %532 = vmatprep.subr.mxu0 0.0
    %533 = vmatpush1.msra.mxu0 0.0
    %534 = vmatprep.subr.mxu0 0.0
    %535 = vmatpush1.msra.mxu0 0.0
    %536 = vmatprep.subr.mxu0 0.0
    %537 = vmatpush1.msra.mxu0 0.0
    %538 = vmatprep.subr.mxu0 0.0
    %539 = vmatpush1.msra.mxu0 0.0
    %540 = vmatprep.subr.mxu0 0.0
    %541 = vmatpush1.msra.mxu0 0.0
    %542 = vmatprep.subr.mxu0 0.0
    %543 = vmatpush1.msra.mxu0 0.0
    %544 = vmatprep.subr.mxu0 0.0
    %545 = vmatpush1.msra.mxu0 0.0
    %546 = vmatprep.subr.mxu0 0.0
    %547 = vmatpush1.msra.mxu0 0.0
    %548 = vmatprep.subr.mxu0 0.0
    %549 = vmatpush1.msra.mxu0 0.0
    %550 = vmatprep.subr.mxu0 0.0
    %551 = vmatpush1.msra.mxu0 0.0
    %552 = vmatprep.subr.mxu0 0.0
    %553 = vmatpush1.msra.mxu0 0.0
    %554 = vmatprep.subr.mxu0 0.0
    %555 = vmatpush1.msra.mxu0 0.0
    %556 = vmatprep.mubr.f32.mxu0 0.0
    %557 = vmatmul.mubr.f32.gmra.mrb[0].mxu0 %v490
    %v558 = vpop.f32.mrb[0].mxu0
    %v559 = vadd.f32 0.0, %v558
    %v560 = vpop.f32.mrb[0].mxu0
    %561 = vdwg.mxu0
    %v562 = vadd.f32 %v173, %v559
    %v563 = vtanh.pop %v562
    %v565 = vsel %vm176, %v563, 0
    %567 = vmatprep.subr.mxu0 0.0
    %568 = vmatpush1.msra.mxu0 %v81
    %569 = vmatprep.subr.mxu0 0.0
    %570 = vmatpush1.msra.mxu0 %v82
    %571 = vmatprep.subr.mxu0 0.0
    %572 = vmatpush1.msra.mxu0 %v83
    %573 = vmatprep.subr.mxu0 0.0
    %574 = vmatpush1.msra.mxu0 %v84
    %575 = vmatprep.subr.mxu0 0.0
    %576 = vmatpush1.msra.mxu0 0.0
    %577 = vmatprep.subr.mxu0 0.0
    %578 = vmatpush1.msra.mxu0 0.0
    %579 = vmatprep.subr.mxu0 0.0
    %580 = vmatpush1.msra.mxu0 0.0
    %581 = vmatprep.subr.mxu0 0.0
    %582 = vmatpush1.msra.mxu0 0.0
    %583 = vmatprep.subr.mxu0 0.0
    %584 = vmatpush1.msra.mxu0 0.0
    %585 = vmatprep.subr.mxu0 0.0
    %586 = vmatpush1.msra.mxu0 0.0
    %587 = vmatprep.subr.mxu0 0.0
    %588 = vmatpush1.msra.mxu0 0.0
    %589 = vmatprep.subr.mxu0 0.0
    %590 = vmatpush1.msra.mxu0 0.0
    %591 = vmatprep.subr.mxu0 0.0
    %592 = vmatpush1.msra.mxu0 0.0
    %593 = vmatprep.subr.mxu0 0.0
    %594 = vmatpush1.msra.mxu0 0.0
    %595 = vmatprep.subr.mxu0 0.0
    %596 = vmatpush1.msra.mxu0 0.0
    %597 = vmatprep.subr.mxu0 0.0
    %598 = vmatpush1.msra.mxu0 0.0
    %599 = vmatprep.subr.mxu0 0.0
    %600 = vmatpush1.msra.mxu0 0.0
    %601 = vmatprep.subr.mxu0 0.0
    %602 = vmatpush1.msra.mxu0 0.0
    %603 = vmatprep.subr.mxu0 0.0
    %604 = vmatpush1.msra.mxu0 0.0
    %605 = vmatprep.subr.mxu0 0.0
    %606 = vmatpush1.msra.mxu0 0.0
    %607 = vmatprep.subr.mxu0 0.0
    %608 = vmatpush1.msra.mxu0 0.0
    %609 = vmatprep.subr.mxu0 0.0
    %610 = vmatpush1.msra.mxu0 0.0
    %611 = vmatprep.subr.mxu0 0.0
    %612 = vmatpush1.msra.mxu0 0.0
    %613 = vmatprep.subr.mxu0 0.0
    %614 = vmatpush1.msra.mxu0 0.0
    %615 = vmatprep.subr.mxu0 0.0
    %616 = vmatpush1.msra.mxu0 0.0
    %617 = vmatprep.subr.mxu0 0.0
    %618 = vmatpush1.msra.mxu0 0.0
    %619 = vmatprep.subr.mxu0 0.0
    %620 = vmatpush1.msra.mxu0 0.0
    %621 = vmatprep.subr.mxu0 0.0
    %622 = vmatpush1.msra.mxu0 0.0
    %623 = vmatprep.subr.mxu0 0.0
    %624 = vmatpush1.msra.mxu0 0.0
    %625 = vmatprep.subr.mxu0 0.0
    %626 = vmatpush1.msra.mxu0 0.0
    %627 = vmatprep.subr.mxu0 0.0
    %628 = vmatpush1.msra.mxu0 0.0
    %629 = vmatprep.subr.mxu0 0.0
    %630 = vmatpush1.msra.mxu0 0.0
    %631 = vmatprep.mubr.f32.mxu0 0.0
    %632 = vmatmul.mubr.f32.gmra.mrb[0].mxu0 %v565
    %v633 = vpop.f32.mrb[0].mxu0
    %v634 = vadd.f32 0.0, %v633
    %v635 = vpop.f32.mrb[0].mxu0
    %636 = vdwg.mxu0
    %v638 = vrot.slane %v634, 6
    %v640 = vadd.f32 %v173, %v638
    %v641 = vtanh.pop %v640
    %v643 = vrot.slane %v641, 2
    %v644 = vsel %vm176, %v643, 0
    %646 = vmatprep.subr.mxu0 0.0
    %647 = vmatpush1.msra.mxu0 %v81
    %648 = vmatprep.subr.mxu0 0.0
    %649 = vmatpush1.msra.mxu0 %v82
    %650 = vmatprep.subr.mxu0 0.0
    %651 = vmatpush1.msra.mxu0 %v83
    %652 = vmatprep.subr.mxu0 0.0
    %653 = vmatpush1.msra.mxu0 %v84
    %654 = vmatprep.subr.mxu0 0.0
    %655 = vmatpush1.msra.mxu0 0.0
    %656 = vmatprep.subr.mxu0 0.0
    %657 = vmatpush1.msra.mxu0 0.0
    %658 = vmatprep.subr.mxu0 0.0
    %659 = vmatpush1.msra.mxu0 0.0
    %660 = vmatprep.subr.mxu0 0.0
    %661 = vmatpush1.msra.mxu0 0.0
    %662 = vmatprep.subr.mxu0 0.0
    %663 = vmatpush1.msra.mxu0 0.0
    %664 = vmatprep.subr.mxu0 0.0
    %665 = vmatpush1.msra.mxu0 0.0
    %666 = vmatprep.subr.mxu0 0.0
    %667 = vmatpush1.msra.mxu0 0.0
    %668 = vmatprep.subr.mxu0 0.0
    %669 = vmatpush1.msra.mxu0 0.0
    %670 = vmatprep.subr.mxu0 0.0
    %671 = vmatpush1.msra.mxu0 0.0
    %672 = vmatprep.subr.mxu0 0.0
    %673 = vmatpush1.msra.mxu0 0.0
    %674 = vmatprep.subr.mxu0 0.0
    %675 = vmatpush1.msra.mxu0 0.0
    %676 = vmatprep.subr.mxu0 0.0
    %677 = vmatpush1.msra.mxu0 0.0
    %678 = vmatprep.subr.mxu0 0.0
    %679 = vmatpush1.msra.mxu0 0.0
    %680 = vmatprep.subr.mxu0 0.0
    %681 = vmatpush1.msra.mxu0 0.0
    %682 = vmatprep.subr.mxu0 0.0
    %683 = vmatpush1.msra.mxu0 0.0
    %684 = vmatprep.subr.mxu0 0.0
    %685 = vmatpush1.msra.mxu0 0.0
    %686 = vmatprep.subr.mxu0 0.0
    %687 = vmatpush1.msra.mxu0 0.0
    %688 = vmatprep.subr.mxu0 0.0
    %689 = vmatpush1.msra.mxu0 0.0
    %690 = vmatprep.subr.mxu0 0.0
    %691 = vmatpush1.msra.mxu0 0.0
    %692 = vmatprep.subr.mxu0 0.0
    %693 = vmatpush1.msra.mxu0 0.0
    %694 = vmatprep.subr.mxu0 0.0
    %695 = vmatpush1.msra.mxu0 0.0
    %696 = vmatprep.subr.mxu0 0.0
    %697 = vmatpush1.msra.mxu0 0.0
    %698 = vmatprep.subr.mxu0 0.0
    %699 = vmatpush1.msra.mxu0 0.0
    %700 = vmatprep.subr.mxu0 0.0
    %701 = vmatpush1.msra.mxu0 0.0
    %702 = vmatprep.subr.mxu0 0.0
    %703 = vmatpush1.msra.mxu0 0.0
    %704 = vmatprep.subr.mxu0 0.0
    %705 = vmatpush1.msra.mxu0 0.0
    %706 = vmatprep.subr.mxu0 0.0
    %707 = vmatpush1.msra.mxu0 0.0
    %708 = vmatprep.subr.mxu0 0.0
    %709 = vmatpush1.msra.mxu0 0.0
    %710 = vmatprep.mubr.f32.mxu0 0.0
    %711 = vmatmul.mubr.f32.gmra.mrb[0].mxu0 %v644
    %v712 = vpop.f32.mrb[0].mxu0
    %v713 = vadd.f32 0.0, %v712
    %v714 = vpop.f32.mrb[0].mxu0
    %715 = vdwg.mxu0
    %v717 = vrot.slane %v713, 4
    %v719 = vadd.f32 %v173, %v717
    %v720 = vtanh.pop %v719
    %v722 = vrot.slane %v720, 4
    %v723 = vsel %vm176, %v722, 0
    %725 = vmatprep.subr.mxu0 0.0
    %726 = vmatpush1.msra.mxu0 %v81
    %727 = vmatprep.subr.mxu0 0.0
    %728 = vmatpush1.msra.mxu0 %v82
    %729 = vmatprep.subr.mxu0 0.0
    %730 = vmatpush1.msra.mxu0 %v83
    %731 = vmatprep.subr.mxu0 0.0
    %732 = vmatpush1.msra.mxu0 %v84
    %733 = vmatprep.subr.mxu0 0.0
    %734 = vmatpush1.msra.mxu0 0.0
    %735 = vmatprep.subr.mxu0 0.0
    %736 = vmatpush1.msra.mxu0 0.0
    %737 = vmatprep.subr.mxu0 0.0
    %738 = vmatpush1.msra.mxu0 0.0
    %739 = vmatprep.subr.mxu0 0.0
    %740 = vmatpush1.msra.mxu0 0.0
    %741 = vmatprep.subr.mxu0 0.0
    %742 = vmatpush1.msra.mxu0 0.0
    %743 = vmatprep.subr.mxu0 0.0
    %744 = vmatpush1.msra.mxu0 0.0
    %745 = vmatprep.subr.mxu0 0.0
    %746 = vmatpush1.msra.mxu0 0.0
    %747 = vmatprep.subr.mxu0 0.0
    %748 = vmatpush1.msra.mxu0 0.0
    %749 = vmatprep.subr.mxu0 0.0
    %750 = vmatpush1.msra.mxu0 0.0
    %751 = vmatprep.subr.mxu0 0.0
    %752 = vmatpush1.msra.mxu0 0.0
    %753 = vmatprep.subr.mxu0 0.0
    %754 = vmatpush1.msra.mxu0 0.0
    %755 = vmatprep.subr.mxu0 0.0
    %756 = vmatpush1.msra.mxu0 0.0
    %757 = vmatprep.subr.mxu0 0.0
    %758 = vmatpush1.msra.mxu0 0.0
    %759 = vmatprep.subr.mxu0 0.0
    %760 = vmatpush1.msra.mxu0 0.0
    %761 = vmatprep.subr.mxu0 0.0
    %762 = vmatpush1.msra.mxu0 0.0
    %763 = vmatprep.subr.mxu0 0.0
    %764 = vmatpush1.msra.mxu0 0.0
    %765 = vmatprep.subr.mxu0 0.0
    %766 = vmatpush1.msra.mxu0 0.0
    %767 = vmatprep.subr.mxu0 0.0
    %768 = vmatpush1.msra.mxu0 0.0
    %769 = vmatprep.subr.mxu0 0.0
    %770 = vmatpush1.msra.mxu0 0.0
    %771 = vmatprep.subr.mxu0 0.0
    %772 = vmatpush1.msra.mxu0 0.0
    %773 = vmatprep.subr.mxu0 0.0
    %774 = vmatpush1.msra.mxu0 0.0
    %775 = vmatprep.subr.mxu0 0.0
    %776 = vmatpush1.msra.mxu0 0.0
    %777 = vmatprep.subr.mxu0 0.0
    %778 = vmatpush1.msra.mxu0 0.0
    %779 = vmatprep.subr.mxu0 0.0
    %780 = vmatpush1.msra.mxu0 0.0
    %781 = vmatprep.subr.mxu0 0.0
    %782 = vmatpush1.msra.mxu0 0.0
    %783 = vmatprep.subr.mxu0 0.0
    %784 = vmatpush1.msra.mxu0 0.0
    %785 = vmatprep.subr.mxu0 0.0
    %786 = vmatpush1.msra.mxu0 0.0
    %787 = vmatprep.subr.mxu0 0.0
    %788 = vmatpush1.msra.mxu0 0.0
    %789 = vmatprep.mubr.f32.mxu0 0.0
    %790 = vmatmul.mubr.f32.gmra.mrb[0].mxu0 %v723
    %v791 = vpop.f32.mrb[0].mxu0
    %v792 = vadd.f32 0.0, %v791
    %v793 = vpop.f32.mrb[0].mxu0
    %794 = vdwg.mxu0
    %v796 = vrot.slane %v792, 2
    %v798 = vadd.f32 %v173, %v796
    %v799 = vtanh.pop %v798
    %v800 = vld [vmem:[#allocation8] sm:$0xff]
    %v801 = vld [vmem:[#allocation8 + $0x8] sm:$0xff]
    %v802 = vld [vmem:[#allocation8 + $0x10] sm:$0xff]
    %v803 = vld [vmem:[#allocation8 + $0x18] sm:$0xff]
    %v804 = vld [vmem:[%s5] sm:$0x1]
    %v806 = vlaneseq
    %v807 = vshrl.u32 %v806, 7
    %v808 = vsub.s32 0, %v807
    %v809 = vrot.slane %v804, %v808
    %v812 = vrot.slane %v799, 6
    %v813 = vsel %vm176, %v812, 0
    %815 = vmatprep.subr.mxu0 0.0
    %816 = vmatpush1.msra.mxu0 %v800
    %817 = vmatprep.subr.mxu0 0.0
    %818 = vmatpush1.msra.mxu0 %v801
    %819 = vmatprep.subr.mxu0 0.0
    %820 = vmatpush1.msra.mxu0 %v802
    %821 = vmatprep.subr.mxu0 0.0
    %822 = vmatpush1.msra.mxu0 %v803
    %823 = vmatprep.subr.mxu0 0.0
    %824 = vmatpush1.msra.mxu0 0.0
    %825 = vmatprep.subr.mxu0 0.0
    %826 = vmatpush1.msra.mxu0 0.0
    %827 = vmatprep.subr.mxu0 0.0
    %828 = vmatpush1.msra.mxu0 0.0
    %829 = vmatprep.subr.mxu0 0.0
    %830 = vmatpush1.msra.mxu0 0.0
    %831 = vmatprep.subr.mxu0 0.0
    %832 = vmatpush1.msra.mxu0 0.0
    %833 = vmatprep.subr.mxu0 0.0
    %834 = vmatpush1.msra.mxu0 0.0
    %835 = vmatprep.subr.mxu0 0.0
    %836 = vmatpush1.msra.mxu0 0.0
    %837 = vmatprep.subr.mxu0 0.0
    %838 = vmatpush1.msra.mxu0 0.0
    %839 = vmatprep.subr.mxu0 0.0
    %840 = vmatpush1.msra.mxu0 0.0
    %841 = vmatprep.subr.mxu0 0.0
    %842 = vmatpush1.msra.mxu0 0.0
    %843 = vmatprep.subr.mxu0 0.0
    %844 = vmatpush1.msra.mxu0 0.0
    %845 = vmatprep.subr.mxu0 0.0
    %846 = vmatpush1.msra.mxu0 0.0
    %847 = vmatprep.subr.mxu0 0.0
    %848 = vmatpush1.msra.mxu0 0.0
    %849 = vmatprep.subr.mxu0 0.0
    %850 = vmatpush1.msra.mxu0 0.0
    %851 = vmatprep.subr.mxu0 0.0
    %852 = vmatpush1.msra.mxu0 0.0
    %853 = vmatprep.subr.mxu0 0.0
    %854 = vmatpush1.msra.mxu0 0.0
    %855 = vmatprep.subr.mxu0 0.0
    %856 = vmatpush1.msra.mxu0 0.0
    %857 = vmatprep.subr.mxu0 0.0
    %858 = vmatpush1.msra.mxu0 0.0
    %859 = vmatprep.subr.mxu0 0.0
    %860 = vmatpush1.msra.mxu0 0.0
    %861 = vmatprep.subr.mxu0 0.0
    %862 = vmatpush1.msra.mxu0 0.0
    %863 = vmatprep.subr.mxu0 0.0
    %864 = vmatpush1.msra.mxu0 0.0
    %865 = vmatprep.subr.mxu0 0.0
    %866 = vmatpush1.msra.mxu0 0.0
    %867 = vmatprep.subr.mxu0 0.0
    %868 = vmatpush1.msra.mxu0 0.0
    %869 = vmatprep.subr.mxu0 0.0
    %870 = vmatpush1.msra.mxu0 0.0
    %871 = vmatprep.subr.mxu0 0.0
    %872 = vmatpush1.msra.mxu0 0.0
    %873 = vmatprep.subr.mxu0 0.0
    %874 = vmatpush1.msra.mxu0 0.0
    %875 = vmatprep.subr.mxu0 0.0
    %876 = vmatpush1.msra.mxu0 0.0
    %877 = vmatprep.subr.mxu0 0.0
    %878 = vmatpush1.msra.mxu0 0.0
    %879 = vmatprep.mubr.f32.mxu0 0.0
    %880 = vmatmul.mubr.f32.gmra.mrb[0].mxu0 %v813
    %v881 = vpop.f32.mrb[0].mxu0
    %v882 = vadd.f32 %v809, %v881
    %v883 = vpop.f32.mrb[0].mxu0
    %884 = vdwg.mxu0
    %885 = vst [vmem:[#allocation10] sm:$0x3] %v882
    // Predicated region
    $region42: #{tpu_custom_call.1} parent=1 // pred_check
      _
    $region43: #{tpu_custom_call.1} parent=1 // pred_check_branch
      %887 = sbr.rel (0) target = $region45
    $region44: #{tpu_custom_call.1} parent=1 // pred_region
      %s889 = ssub.s32 32, 32
      %890 = vsyncadd [#allocation4], %s889
      %s892 = sshll.u32 [#allocation10], 4
      %s893 = int_to_ptr.vmem [resolvable:$true] %s892
      %895 = dma.vmem_to_hbm [thread:$0]  %s893, 32, %s6, [#allocation4]
    $region45: #{tpu_custom_call.1} parent=1 // pred_fallthru
      _
    // Predicated region
    $region46: #{tpu_custom_call.1} parent=1 // pred_check
      _
    $region47: #{tpu_custom_call.1} parent=1 // pred_check_branch
      %897 = sbr.rel (0) target = $region49
    $region48: #{tpu_custom_call.1} parent=1 // pred_region
      %898 = dma.done [#allocation4], 32
    $region49: #{tpu_custom_call.1} parent=1 // pred_fallthru
      _
    %899 = vsyncpa [#allocation3], 1
    %900 = vsyncpa [#allocation6], 1
    %901 = vsyncpa [#allocation9], 1
    %902 = vsyncpa [#allocation4], 1

</llo_original>
